<compile_context>
chip_gen: v6e
topology: v6e:2x2x1
jax: 0.10.0
libtpu: 0.0.40
codegen_flags: <defaults>
</compile_context>

<pallas_src>
import functools

import jax
import jax.numpy as jnp
from jax.experimental import pallas as pl
from jax.experimental.pallas import tpu as pltpu


def _resblock_kernel(x_ref, m_ref, w1_ref, b1_ref, w2_ref, b2_ref, o_ref,
                     patch_ref, *, H, W):
    # x_ref    : (1, C, H*W)  one image; channels on sublanes, flattened
    #                         spatial index p = h*W + w on lanes (== NCHW).
    # m_ref    : (9, 1, H*W)  per-tap boundary masks (1.0 valid, 0.0 halo).
    # w*_ref   : (C, 9*C)     folded weights: w[co, (ky*3+kx)*C + ci].
    # b*_ref   : (C, 1)       biases.
    # o_ref    : (1, C, H*W)  output image.
    # patch_ref: (9*C, H*W)   VMEM scratch holding the im2col patch.
    C = x_ref.shape[1]
    HW = H * W

    x2 = x_ref[0]                                       # (C, H*W)

    # Tap t = ky*3 + kx reads pixel (h + ky - 1, w + kx - 1); on the flattened
    # lane axis that's a shift of s = (ky-1)*W + (kx-1).  pltpu.roll follows
    # jnp.roll semantics (out[p] = in[p - shift]), so use shift = (-s) % HW.
    shifts = [(-((ky - 1) * W + (kx - 1))) % HW
              for ky in range(3) for kx in range(3)]

    def conv3x3(v, w_ref, b_ref):
        # Build the (9*C, H*W) patch: 9 rolled + masked copies of v.
        for t, shift in enumerate(shifts):
            slab = pltpu.roll(v, shift, axis=1) if shift else v
            patch_ref[t * C:(t + 1) * C, :] = (
                slab * m_ref[t]).astype(patch_ref.dtype)
        # Single MXU matmul per conv, contraction depth 9*C.
        return jnp.dot(w_ref[...], patch_ref[...],
                       preferred_element_type=jnp.float32) + b_ref[...]

    out1 = jnp.maximum(conv3x3(x2, w1_ref, b1_ref), 0.0)   # conv1 + ReLU
    out2 = conv3x3(out1, w2_ref, b2_ref)                   # conv2
    o_ref[0] = (x2 + out2).astype(o_ref.dtype)             # + identity


@jax.jit
def residual_block_nobn(x_nchw, w1_oihw, b1, w2_oihw, b2):
    """x_nchw: (N, C, H, W) float32; weights in PyTorch OIHW layout."""
    N, C, H, W = x_nchw.shape
    HW = H * W
    dtype = x_nchw.dtype

    # Free, contiguous reshape -- no transpose / pad HBM round trips.
    x2 = x_nchw.reshape(N, C, HW)

    # Fold the 9 taps into the contraction: OIHW -> (Cout, ky, kx, Cin)
    # -> (Cout, 9*Cin).  Tiny arrays, constant-folded under jit.
    w1f = jnp.transpose(w1_oihw, (0, 2, 3, 1)).reshape(C, 9 * C)
    w2f = jnp.transpose(w2_oihw, (0, 2, 3, 1)).reshape(C, 9 * C)
    b1c = b1.reshape(C, 1).astype(jnp.float32)
    b2c = b2.reshape(C, 1).astype(jnp.float32)

    # Per-tap boundary masks over the flattened spatial axis (constant under jit).
    hpos = jnp.arange(H, dtype=jnp.int32)
    wpos = jnp.arange(W, dtype=jnp.int32)
    masks = []
    for ky in range(3):
        for kx in range(3):
            hv = (hpos + (ky - 1) >= 0) & (hpos + (ky - 1) < H)
            wv = (wpos + (kx - 1) >= 0) & (wpos + (kx - 1) < W)
            masks.append((hv[:, None] & wv[None, :]).reshape(HW))
    mask = jnp.stack(masks, axis=0).reshape(9, 1, HW).astype(dtype)

    out = pl.pallas_call(
        functools.partial(_resblock_kernel, H=H, W=W),
        out_shape=jax.ShapeDtypeStruct((N, C, HW), dtype),
        grid_spec=pltpu.PrefetchScalarGridSpec(
            num_scalar_prefetch=0,
            grid=(N,),
            in_specs=[
                pl.BlockSpec((1, C, HW), lambda b: (b, 0, 0)),      # x
                pl.BlockSpec((9, 1, HW), lambda b: (0, 0, 0)),      # masks
                pl.BlockSpec((C, 9 * C), lambda b: (0, 0)),         # w1 folded
                pl.BlockSpec((C, 1), lambda b: (0, 0)),             # b1
                pl.BlockSpec((C, 9 * C), lambda b: (0, 0)),         # w2 folded
                pl.BlockSpec((C, 1), lambda b: (0, 0)),             # b2
            ],
            out_specs=pl.BlockSpec((1, C, HW), lambda b: (b, 0, 0)),
            scratch_shapes=[pltpu.VMEM((9 * C, HW), jnp.float32)],
        ),
        compiler_params=pltpu.CompilerParams(
            dimension_semantics=("parallel",),   # v7x: shard batch over 2 TCs
            vmem_limit_bytes=48 * 1024 * 1024,
        ),
    )(x2, mask, w1f, b1c, w2f, b2c)

    return out.reshape(N, C, H, W)


def _reference(x, w1, b1, w2, b2):
    """Pure-JAX reference matching torch F.conv2d semantics (NCHW / OIHW)."""
    dn = ("NCHW", "OIHW", "NCHW")
    y = jax.lax.conv_general_dilated(
        x, w1, (1, 1), ((1, 1), (1, 1)), dimension_numbers=dn)
    y = y + b1[None, :, None, None]
    y = jnp.maximum(y, 0.0)
    y = jax.lax.conv_general_dilated(
        y, w2, (1, 1), ((1, 1), (1, 1)), dimension_numbers=dn)
    y = y + b2[None, :, None, None]
    return x + y


if __name__ == "__main__":
    # Small shapes: batch=2, nf=4 channels, 16x16 spatial.
    N, nf, H, W = 2, 4, 16, 16

    key = jax.random.PRNGKey(0)
    k_w1, k_w2, k_b1, k_b2, k_x = jax.random.split(key, 5)

    # kaiming_normal_(a=0, mode='fan_in') scaled by 0.1 (as initialize_weights).
    fan_in = nf * 3 * 3
    std = (2.0 / fan_in) ** 0.5
    w1 = jax.random.normal(k_w1, (nf, nf, 3, 3), jnp.float32) * std * 0.1
    w2 = jax.random.normal(k_w2, (nf, nf, 3, 3), jnp.float32) * std * 0.1
    # Module init zeroes biases; use small nonzero values to exercise the bias path.
    b1 = jax.random.normal(k_b1, (nf,), jnp.float32) * 0.01
    b2 = jax.random.normal(k_b2, (nf,), jnp.float32) * 0.01

    x = jax.random.normal(k_x, (N, nf, H, W), jnp.float32)

    out = jax.block_until_ready(residual_block_nobn(x, w1, b1, w2, b2))

    ref = _reference(x, w1, b1, w2, b2)
    assert out.shape == (N, nf, H, W)
    assert jnp.allclose(out, ref, atol=1e-4, rtol=1e-4), "mismatch vs reference"

    print("KERNEL_OK")
</pallas_src>

<mosaic_0001>
module attributes {stable_mosaic.version = 11 : i64} {
  func.func @_resblock_kernel(%arg0: i32, %arg1: memref<1x4x256xf32, #tpu.memory_space<vmem>>, %arg2: memref<9x1x256xf32, #tpu.memory_space<vmem>>, %arg3: memref<4x36xf32, #tpu.memory_space<vmem>>, %arg4: memref<4x1xf32, #tpu.memory_space<vmem>>, %arg5: memref<4x36xf32, #tpu.memory_space<vmem>>, %arg6: memref<4x1xf32, #tpu.memory_space<vmem>>, %arg7: memref<1x4x256xf32, #tpu.memory_space<vmem>>, %arg8: memref<36x256xf32, #tpu.memory_space<vmem>>) attributes {dimension_semantics = [#tpu.dimension_semantics<parallel>], iteration_bounds = array<i64: 2>, scalar_prefetch = 0 : i64, scratch_operands = 1 : i64, tpu.core_type = #tpu.core_type<tc>, window_params = [{transform_indices = @transform_0, window_bounds = array<i64: 1, 4, 256>}, {pipeline_mode = #tpu.pipeline_mode<synchronous>, transform_indices = @transform_1, window_bounds = array<i64: 9, 1, 256>}, {pipeline_mode = #tpu.pipeline_mode<synchronous>, transform_indices = @transform_2, window_bounds = array<i64: 4, 36>}, {pipeline_mode = #tpu.pipeline_mode<synchronous>, transform_indices = @transform_3, window_bounds = array<i64: 4, 1>}, {pipeline_mode = #tpu.pipeline_mode<synchronous>, transform_indices = @transform_4, window_bounds = array<i64: 4, 36>}, {pipeline_mode = #tpu.pipeline_mode<synchronous>, transform_indices = @transform_5, window_bounds = array<i64: 4, 1>}, {transform_indices = @transform_6, window_bounds = array<i64: 1, 4, 256>}]} {
    %c0 = arith.constant 0 : index
    %c0_0 = arith.constant 0 : index
    %c0_1 = arith.constant 0 : index
    %0 = vector.load %arg1[%c0, %c0_0, %c0_1] : memref<1x4x256xf32, #tpu.memory_space<vmem>>, vector<1x4x256xf32>
    %1 = vector.shape_cast %0 : vector<1x4x256xf32> to vector<4x256xf32>
    %c17_i32 = arith.constant 17 : i32
    %2 = tpu.dynamic_rotate %1 by %c17_i32 dim 1 : vector<4x256xf32>, i32 -> vector<4x256xf32>
    %c0_2 = arith.constant 0 : index
    %c0_3 = arith.constant 0 : index
    %c0_4 = arith.constant 0 : index
    %3 = vector.load %arg2[%c0_2, %c0_3, %c0_4] : memref<9x1x256xf32, #tpu.memory_space<vmem>>, vector<1x1x256xf32>
    %4 = vector.shape_cast %3 : vector<1x1x256xf32> to vector<1x256xf32>
    %5 = vector.broadcast %4 : vector<1x256xf32> to vector<4x256xf32>
    %6 = arith.mulf %2, %5 : vector<4x256xf32>
    %c0_5 = arith.constant 0 : index
    %c0_6 = arith.constant 0 : index
    %7 = vector.load %arg8[%c0_5, %c0_6] : memref<36x256xf32, #tpu.memory_space<vmem>>, vector<4x256xf32>
    tpu.vector_store %arg8[%c0_5, %c0_6], %6 {strides = array<i32>} : memref<36x256xf32, #tpu.memory_space<vmem>>, vector<4x256xf32>,
    %c16_i32 = arith.constant 16 : i32
    %8 = tpu.dynamic_rotate %1 by %c16_i32 dim 1 : vector<4x256xf32>, i32 -> vector<4x256xf32>
    %c1 = arith.constant 1 : index
    %c0_7 = arith.constant 0 : index
    %c0_8 = arith.constant 0 : index
    %9 = vector.load %arg2[%c1, %c0_7, %c0_8] : memref<9x1x256xf32, #tpu.memory_space<vmem>>, vector<1x1x256xf32>
    %10 = vector.shape_cast %9 : vector<1x1x256xf32> to vector<1x256xf32>
    %11 = vector.broadcast %10 : vector<1x256xf32> to vector<4x256xf32>
    %12 = arith.mulf %8, %11 : vector<4x256xf32>
    %c4 = arith.constant 4 : index
    %c0_9 = arith.constant 0 : index
    %13 = vector.load %arg8[%c4, %c0_9] : memref<36x256xf32, #tpu.memory_space<vmem>>, vector<4x256xf32>
    tpu.vector_store %arg8[%c4, %c0_9], %12 {strides = array<i32>} : memref<36x256xf32, #tpu.memory_space<vmem>>, vector<4x256xf32>,
    %c15_i32 = arith.constant 15 : i32
    %14 = tpu.dynamic_rotate %1 by %c15_i32 dim 1 : vector<4x256xf32>, i32 -> vector<4x256xf32>
    %c2 = arith.constant 2 : index
    %c0_10 = arith.constant 0 : index
    %c0_11 = arith.constant 0 : index
    %15 = vector.load %arg2[%c2, %c0_10, %c0_11] : memref<9x1x256xf32, #tpu.memory_space<vmem>>, vector<1x1x256xf32>
    %16 = vector.shape_cast %15 : vector<1x1x256xf32> to vector<1x256xf32>
    %17 = vector.broadcast %16 : vector<1x256xf32> to vector<4x256xf32>
    %18 = arith.mulf %14, %17 : vector<4x256xf32>
    %c8 = arith.constant 8 : index
    %c0_12 = arith.constant 0 : index
    %19 = vector.load %arg8[%c8, %c0_12] : memref<36x256xf32, #tpu.memory_space<vmem>>, vector<4x256xf32>
    tpu.vector_store %arg8[%c8, %c0_12], %18 {strides = array<i32>} : memref<36x256xf32, #tpu.memory_space<vmem>>, vector<4x256xf32>,
    %c1_i32 = arith.constant 1 : i32
    %20 = tpu.dynamic_rotate %1 by %c1_i32 dim 1 : vector<4x256xf32>, i32 -> vector<4x256xf32>
    %c3 = arith.constant 3 : index
    %c0_13 = arith.constant 0 : index
    %c0_14 = arith.constant 0 : index
    %21 = vector.load %arg2[%c3, %c0_13, %c0_14] : memref<9x1x256xf32, #tpu.memory_space<vmem>>, vector<1x1x256xf32>
    %22 = vector.shape_cast %21 : vector<1x1x256xf32> to vector<1x256xf32>
    %23 = vector.broadcast %22 : vector<1x256xf32> to vector<4x256xf32>
    %24 = arith.mulf %20, %23 : vector<4x256xf32>
    %c12 = arith.constant 12 : index
    %c0_15 = arith.constant 0 : index
    %25 = vector.load %arg8[%c12, %c0_15] : memref<36x256xf32, #tpu.memory_space<vmem>>, vector<4x256xf32>
    tpu.vector_store %arg8[%c12, %c0_15], %24 {strides = array<i32>} : memref<36x256xf32, #tpu.memory_space<vmem>>, vector<4x256xf32>,
    %c4_16 = arith.constant 4 : index
    %c0_17 = arith.constant 0 : index
    %c0_18 = arith.constant 0 : index
    %26 = vector.load %arg2[%c4_16, %c0_17, %c0_18] : memref<9x1x256xf32, #tpu.memory_space<vmem>>, vector<1x1x256xf32>
    %27 = vector.shape_cast %26 : vector<1x1x256xf32> to vector<1x256xf32>
    %28 = vector.broadcast %27 : vector<1x256xf32> to vector<4x256xf32>
    %29 = arith.mulf %1, %28 : vector<4x256xf32>
    %c16 = arith.constant 16 : index
    %c0_19 = arith.constant 0 : index
    %30 = vector.load %arg8[%c16, %c0_19] : memref<36x256xf32, #tpu.memory_space<vmem>>, vector<4x256xf32>
    tpu.vector_store %arg8[%c16, %c0_19], %29 {strides = array<i32>} : memref<36x256xf32, #tpu.memory_space<vmem>>, vector<4x256xf32>,
    %c255_i32 = arith.constant 255 : i32
    %31 = tpu.dynamic_rotate %1 by %c255_i32 dim 1 : vector<4x256xf32>, i32 -> vector<4x256xf32>
    %c5 = arith.constant 5 : index
    %c0_20 = arith.constant 0 : index
    %c0_21 = arith.constant 0 : index
    %32 = vector.load %arg2[%c5, %c0_20, %c0_21] : memref<9x1x256xf32, #tpu.memory_space<vmem>>, vector<1x1x256xf32>
    %33 = vector.shape_cast %32 : vector<1x1x256xf32> to vector<1x256xf32>
    %34 = vector.broadcast %33 : vector<1x256xf32> to vector<4x256xf32>
    %35 = arith.mulf %31, %34 : vector<4x256xf32>
    %c20 = arith.constant 20 : index
    %c0_22 = arith.constant 0 : index
    %36 = vector.load %arg8[%c20, %c0_22] : memref<36x256xf32, #tpu.memory_space<vmem>>, vector<4x256xf32>
    tpu.vector_store %arg8[%c20, %c0_22], %35 {strides = array<i32>} : memref<36x256xf32, #tpu.memory_space<vmem>>, vector<4x256xf32>,
    %c241_i32 = arith.constant 241 : i32
    %37 = tpu.dynamic_rotate %1 by %c241_i32 dim 1 : vector<4x256xf32>, i32 -> vector<4x256xf32>
    %c6 = arith.constant 6 : index
    %c0_23 = arith.constant 0 : index
    %c0_24 = arith.constant 0 : index
    %38 = vector.load %arg2[%c6, %c0_23, %c0_24] : memref<9x1x256xf32, #tpu.memory_space<vmem>>, vector<1x1x256xf32>
    %39 = vector.shape_cast %38 : vector<1x1x256xf32> to vector<1x256xf32>
    %40 = vector.broadcast %39 : vector<1x256xf32> to vector<4x256xf32>
    %41 = arith.mulf %37, %40 : vector<4x256xf32>
    %c24 = arith.constant 24 : index
    %c0_25 = arith.constant 0 : index
    %42 = vector.load %arg8[%c24, %c0_25] : memref<36x256xf32, #tpu.memory_space<vmem>>, vector<4x256xf32>
    tpu.vector_store %arg8[%c24, %c0_25], %41 {strides = array<i32>} : memref<36x256xf32, #tpu.memory_space<vmem>>, vector<4x256xf32>,
    %c240_i32 = arith.constant 240 : i32
    %43 = tpu.dynamic_rotate %1 by %c240_i32 dim 1 : vector<4x256xf32>, i32 -> vector<4x256xf32>
    %c7 = arith.constant 7 : index
    %c0_26 = arith.constant 0 : index
    %c0_27 = arith.constant 0 : index
    %44 = vector.load %arg2[%c7, %c0_26, %c0_27] : memref<9x1x256xf32, #tpu.memory_space<vmem>>, vector<1x1x256xf32>
    %45 = vector.shape_cast %44 : vector<1x1x256xf32> to vector<1x256xf32>
    %46 = vector.broadcast %45 : vector<1x256xf32> to vector<4x256xf32>
    %47 = arith.mulf %43, %46 : vector<4x256xf32>
    %c28 = arith.constant 28 : index
    %c0_28 = arith.constant 0 : index
    %48 = vector.load %arg8[%c28, %c0_28] : memref<36x256xf32, #tpu.memory_space<vmem>>, vector<4x256xf32>
    tpu.vector_store %arg8[%c28, %c0_28], %47 {strides = array<i32>} : memref<36x256xf32, #tpu.memory_space<vmem>>, vector<4x256xf32>,
    %c239_i32 = arith.constant 239 : i32
    %49 = tpu.dynamic_rotate %1 by %c239_i32 dim 1 : vector<4x256xf32>, i32 -> vector<4x256xf32>
    %c8_29 = arith.constant 8 : index
    %c0_30 = arith.constant 0 : index
    %c0_31 = arith.constant 0 : index
    %50 = vector.load %arg2[%c8_29, %c0_30, %c0_31] : memref<9x1x256xf32, #tpu.memory_space<vmem>>, vector<1x1x256xf32>
    %51 = vector.shape_cast %50 : vector<1x1x256xf32> to vector<1x256xf32>
    %52 = vector.broadcast %51 : vector<1x256xf32> to vector<4x256xf32>
    %53 = arith.mulf %49, %52 : vector<4x256xf32>
    %c32 = arith.constant 32 : index
    %c0_32 = arith.constant 0 : index
    %54 = vector.load %arg8[%c32, %c0_32] : memref<36x256xf32, #tpu.memory_space<vmem>>, vector<4x256xf32>
    tpu.vector_store %arg8[%c32, %c0_32], %53 {strides = array<i32>} : memref<36x256xf32, #tpu.memory_space<vmem>>, vector<4x256xf32>,
    %c0_33 = arith.constant 0 : index
    %c0_34 = arith.constant 0 : index
    %55 = vector.load %arg3[%c0_33, %c0_34] : memref<4x36xf32, #tpu.memory_space<vmem>>, vector<4x36xf32>
    %c0_35 = arith.constant 0 : index
    %c0_36 = arith.constant 0 : index
    %56 = vector.load %arg8[%c0_35, %c0_36] : memref<36x256xf32, #tpu.memory_space<vmem>>, vector<36x256xf32>
    %cst = arith.constant dense<0.000000e+00> : vector<4x256xf32>
    %57 = tpu.matmul %55, %56, %cst {dimension_numbers = #tpu.dot_dimension_numbers<[1], [0], [0], [1], [0, 0, 1, 1], [], []>} : vector<4x36xf32>, vector<36x256xf32>, vector<4x256xf32> -> vector<4x256xf32>
    %c0_37 = arith.constant 0 : index
    %c0_38 = arith.constant 0 : index
    %58 = vector.load %arg4[%c0_37, %c0_38] : memref<4x1xf32, #tpu.memory_space<vmem>>, vector<4x1xf32>
    %59 = vector.broadcast %58 : vector<4x1xf32> to vector<4x256xf32>
    %60 = arith.addf %57, %59 : vector<4x256xf32>
    %cst_39 = arith.constant 0.000000e+00 : f32
    %61 = vector.broadcast %cst_39 : f32 to vector<4x256xf32>
    %62 = arith.maximumf %60, %61 : vector<4x256xf32>
    %c17_i32_40 = arith.constant 17 : i32
    %63 = tpu.dynamic_rotate %62 by %c17_i32_40 dim 1 : vector<4x256xf32>, i32 -> vector<4x256xf32>
    %c0_41 = arith.constant 0 : index
    %c0_42 = arith.constant 0 : index
    %c0_43 = arith.constant 0 : index
    %64 = vector.load %arg2[%c0_41, %c0_42, %c0_43] : memref<9x1x256xf32, #tpu.memory_space<vmem>>, vector<1x1x256xf32>
    %65 = vector.shape_cast %64 : vector<1x1x256xf32> to vector<1x256xf32>
    %66 = vector.broadcast %65 : vector<1x256xf32> to vector<4x256xf32>
    %67 = arith.mulf %63, %66 : vector<4x256xf32>
    %c0_44 = arith.constant 0 : index
    %c0_45 = arith.constant 0 : index
    %68 = vector.load %arg8[%c0_44, %c0_45] : memref<36x256xf32, #tpu.memory_space<vmem>>, vector<4x256xf32>
    tpu.vector_store %arg8[%c0_44, %c0_45], %67 {strides = array<i32>} : memref<36x256xf32, #tpu.memory_space<vmem>>, vector<4x256xf32>,
    %c16_i32_46 = arith.constant 16 : i32
    %69 = tpu.dynamic_rotate %62 by %c16_i32_46 dim 1 : vector<4x256xf32>, i32 -> vector<4x256xf32>
    %c1_47 = arith.constant 1 : index
    %c0_48 = arith.constant 0 : index
    %c0_49 = arith.constant 0 : index
    %70 = vector.load %arg2[%c1_47, %c0_48, %c0_49] : memref<9x1x256xf32, #tpu.memory_space<vmem>>, vector<1x1x256xf32>
    %71 = vector.shape_cast %70 : vector<1x1x256xf32> to vector<1x256xf32>
    %72 = vector.broadcast %71 : vector<1x256xf32> to vector<4x256xf32>
    %73 = arith.mulf %69, %72 : vector<4x256xf32>
    %c4_50 = arith.constant 4 : index
    %c0_51 = arith.constant 0 : index
    %74 = vector.load %arg8[%c4_50, %c0_51] : memref<36x256xf32, #tpu.memory_space<vmem>>, vector<4x256xf32>
    tpu.vector_store %arg8[%c4_50, %c0_51], %73 {strides = array<i32>} : memref<36x256xf32, #tpu.memory_space<vmem>>, vector<4x256xf32>,
    %c15_i32_52 = arith.constant 15 : i32
    %75 = tpu.dynamic_rotate %62 by %c15_i32_52 dim 1 : vector<4x256xf32>, i32 -> vector<4x256xf32>
    %c2_53 = arith.constant 2 : index
    %c0_54 = arith.constant 0 : index
    %c0_55 = arith.constant 0 : index
    %76 = vector.load %arg2[%c2_53, %c0_54, %c0_55] : memref<9x1x256xf32, #tpu.memory_space<vmem>>, vector<1x1x256xf32>
    %77 = vector.shape_cast %76 : vector<1x1x256xf32> to vector<1x256xf32>
    %78 = vector.broadcast %77 : vector<1x256xf32> to vector<4x256xf32>
    %79 = arith.mulf %75, %78 : vector<4x256xf32>
    %c8_56 = arith.constant 8 : index
    %c0_57 = arith.constant 0 : index
    %80 = vector.load %arg8[%c8_56, %c0_57] : memref<36x256xf32, #tpu.memory_space<vmem>>, vector<4x256xf32>
    tpu.vector_store %arg8[%c8_56, %c0_57], %79 {strides = array<i32>} : memref<36x256xf32, #tpu.memory_space<vmem>>, vector<4x256xf32>,
    %c1_i32_58 = arith.constant 1 : i32
    %81 = tpu.dynamic_rotate %62 by %c1_i32_58 dim 1 : vector<4x256xf32>, i32 -> vector<4x256xf32>
    %c3_59 = arith.constant 3 : index
    %c0_60 = arith.constant 0 : index
    %c0_61 = arith.constant 0 : index
    %82 = vector.load %arg2[%c3_59, %c0_60, %c0_61] : memref<9x1x256xf32, #tpu.memory_space<vmem>>, vector<1x1x256xf32>
    %83 = vector.shape_cast %82 : vector<1x1x256xf32> to vector<1x256xf32>
    %84 = vector.broadcast %83 : vector<1x256xf32> to vector<4x256xf32>
    %85 = arith.mulf %81, %84 : vector<4x256xf32>
    %c12_62 = arith.constant 12 : index
    %c0_63 = arith.constant 0 : index
    %86 = vector.load %arg8[%c12_62, %c0_63] : memref<36x256xf32, #tpu.memory_space<vmem>>, vector<4x256xf32>
    tpu.vector_store %arg8[%c12_62, %c0_63], %85 {strides = array<i32>} : memref<36x256xf32, #tpu.memory_space<vmem>>, vector<4x256xf32>,
    %c4_64 = arith.constant 4 : index
    %c0_65 = arith.constant 0 : index
    %c0_66 = arith.constant 0 : index
    %87 = vector.load %arg2[%c4_64, %c0_65, %c0_66] : memref<9x1x256xf32, #tpu.memory_space<vmem>>, vector<1x1x256xf32>
    %88 = vector.shape_cast %87 : vector<1x1x256xf32> to vector<1x256xf32>
    %89 = vector.broadcast %88 : vector<1x256xf32> to vector<4x256xf32>
    %90 = arith.mulf %62, %89 : vector<4x256xf32>
    %c16_67 = arith.constant 16 : index
    %c0_68 = arith.constant 0 : index
    %91 = vector.load %arg8[%c16_67, %c0_68] : memref<36x256xf32, #tpu.memory_space<vmem>>, vector<4x256xf32>
    tpu.vector_store %arg8[%c16_67, %c0_68], %90 {strides = array<i32>} : memref<36x256xf32, #tpu.memory_space<vmem>>, vector<4x256xf32>,
    %c255_i32_69 = arith.constant 255 : i32
    %92 = tpu.dynamic_rotate %62 by %c255_i32_69 dim 1 : vector<4x256xf32>, i32 -> vector<4x256xf32>
    %c5_70 = arith.constant 5 : index
    %c0_71 = arith.constant 0 : index
    %c0_72 = arith.constant 0 : index
    %93 = vector.load %arg2[%c5_70, %c0_71, %c0_72] : memref<9x1x256xf32, #tpu.memory_space<vmem>>, vector<1x1x256xf32>
    %94 = vector.shape_cast %93 : vector<1x1x256xf32> to vector<1x256xf32>
    %95 = vector.broadcast %94 : vector<1x256xf32> to vector<4x256xf32>
    %96 = arith.mulf %92, %95 : vector<4x256xf32>
    %c20_73 = arith.constant 20 : index
    %c0_74 = arith.constant 0 : index
    %97 = vector.load %arg8[%c20_73, %c0_74] : memref<36x256xf32, #tpu.memory_space<vmem>>, vector<4x256xf32>
    tpu.vector_store %arg8[%c20_73, %c0_74], %96 {strides = array<i32>} : memref<36x256xf32, #tpu.memory_space<vmem>>, vector<4x256xf32>,
    %c241_i32_75 = arith.constant 241 : i32
    %98 = tpu.dynamic_rotate %62 by %c241_i32_75 dim 1 : vector<4x256xf32>, i32 -> vector<4x256xf32>
    %c6_76 = arith.constant 6 : index
    %c0_77 = arith.constant 0 : index
    %c0_78 = arith.constant 0 : index
    %99 = vector.load %arg2[%c6_76, %c0_77, %c0_78] : memref<9x1x256xf32, #tpu.memory_space<vmem>>, vector<1x1x256xf32>
    %100 = vector.shape_cast %99 : vector<1x1x256xf32> to vector<1x256xf32>
    %101 = vector.broadcast %100 : vector<1x256xf32> to vector<4x256xf32>
    %102 = arith.mulf %98, %101 : vector<4x256xf32>
    %c24_79 = arith.constant 24 : index
    %c0_80 = arith.constant 0 : index
    %103 = vector.load %arg8[%c24_79, %c0_80] : memref<36x256xf32, #tpu.memory_space<vmem>>, vector<4x256xf32>
    tpu.vector_store %arg8[%c24_79, %c0_80], %102 {strides = array<i32>} : memref<36x256xf32, #tpu.memory_space<vmem>>, vector<4x256xf32>,
    %c240_i32_81 = arith.constant 240 : i32
    %104 = tpu.dynamic_rotate %62 by %c240_i32_81 dim 1 : vector<4x256xf32>, i32 -> vector<4x256xf32>
    %c7_82 = arith.constant 7 : index
    %c0_83 = arith.constant 0 : index
    %c0_84 = arith.constant 0 : index
    %105 = vector.load %arg2[%c7_82, %c0_83, %c0_84] : memref<9x1x256xf32, #tpu.memory_space<vmem>>, vector<1x1x256xf32>
    %106 = vector.shape_cast %105 : vector<1x1x256xf32> to vector<1x256xf32>
    %107 = vector.broadcast %106 : vector<1x256xf32> to vector<4x256xf32>
    %108 = arith.mulf %104, %107 : vector<4x256xf32>
    %c28_85 = arith.constant 28 : index
    %c0_86 = arith.constant 0 : index
    %109 = vector.load %arg8[%c28_85, %c0_86] : memref<36x256xf32, #tpu.memory_space<vmem>>, vector<4x256xf32>
    tpu.vector_store %arg8[%c28_85, %c0_86], %108 {strides = array<i32>} : memref<36x256xf32, #tpu.memory_space<vmem>>, vector<4x256xf32>,
    %c239_i32_87 = arith.constant 239 : i32
    %110 = tpu.dynamic_rotate %62 by %c239_i32_87 dim 1 : vector<4x256xf32>, i32 -> vector<4x256xf32>
    %c8_88 = arith.constant 8 : index
    %c0_89 = arith.constant 0 : index
    %c0_90 = arith.constant 0 : index
    %111 = vector.load %arg2[%c8_88, %c0_89, %c0_90] : memref<9x1x256xf32, #tpu.memory_space<vmem>>, vector<1x1x256xf32>
    %112 = vector.shape_cast %111 : vector<1x1x256xf32> to vector<1x256xf32>
    %113 = vector.broadcast %112 : vector<1x256xf32> to vector<4x256xf32>
    %114 = arith.mulf %110, %113 : vector<4x256xf32>
    %c32_91 = arith.constant 32 : index
    %c0_92 = arith.constant 0 : index
    %115 = vector.load %arg8[%c32_91, %c0_92] : memref<36x256xf32, #tpu.memory_space<vmem>>, vector<4x256xf32>
    tpu.vector_store %arg8[%c32_91, %c0_92], %114 {strides = array<i32>} : memref<36x256xf32, #tpu.memory_space<vmem>>, vector<4x256xf32>,
    %c0_93 = arith.constant 0 : index
    %c0_94 = arith.constant 0 : index
    %116 = vector.load %arg5[%c0_93, %c0_94] : memref<4x36xf32, #tpu.memory_space<vmem>>, vector<4x36xf32>
    %c0_95 = arith.constant 0 : index
    %c0_96 = arith.constant 0 : index
    %117 = vector.load %arg8[%c0_95, %c0_96] : memref<36x256xf32, #tpu.memory_space<vmem>>, vector<36x256xf32>
    %cst_97 = arith.constant dense<0.000000e+00> : vector<4x256xf32>
    %118 = tpu.matmul %116, %117, %cst_97 {dimension_numbers = #tpu.dot_dimension_numbers<[1], [0], [0], [1], [0, 0, 1, 1], [], []>} : vector<4x36xf32>, vector<36x256xf32>, vector<4x256xf32> -> vector<4x256xf32>
    %c0_98 = arith.constant 0 : index
    %c0_99 = arith.constant 0 : index
    %119 = vector.load %arg6[%c0_98, %c0_99] : memref<4x1xf32, #tpu.memory_space<vmem>>, vector<4x1xf32>
    %120 = vector.broadcast %119 : vector<4x1xf32> to vector<4x256xf32>
    %121 = arith.addf %118, %120 : vector<4x256xf32>
    %122 = arith.addf %1, %121 : vector<4x256xf32>
    %c0_100 = arith.constant 0 : index
    %c0_101 = arith.constant 0 : index
    %c0_102 = arith.constant 0 : index
    %123 = vector.load %arg7[%c0_100, %c0_101, %c0_102] : memref<1x4x256xf32, #tpu.memory_space<vmem>>, vector<1x4x256xf32>
    %124 = vector.shape_cast %123 : vector<1x4x256xf32> to vector<4x256xf32>
    %125 = vector.shape_cast %122 : vector<4x256xf32> to vector<1x4x256xf32>
    tpu.vector_store %arg7[%c0_100, %c0_101, %c0_102], %125 {strides = array<i32>} : memref<1x4x256xf32, #tpu.memory_space<vmem>>, vector<1x4x256xf32>,
    return
  }
  func.func @transform_0(%arg0: i32) -> (i32, i32, i32) {
    %c0_i32 = arith.constant 0 : i32
    %c0_i32_0 = arith.constant 0 : i32
    %c0_i32_1 = arith.constant 0 : i32
    return %arg0, %c0_i32, %c0_i32_0 : i32, i32, i32
  }
  func.func @transform_1(%arg0: i32) -> (i32, i32, i32) {
    %c0_i32 = arith.constant 0 : i32
    %c0_i32_0 = arith.constant 0 : i32
    %c0_i32_1 = arith.constant 0 : i32
    %c0_i32_2 = arith.constant 0 : i32
    return %c0_i32, %c0_i32_0, %c0_i32_1 : i32, i32, i32
  }
  func.func @transform_2(%arg0: i32) -> (i32, i32) {
    %c0_i32 = arith.constant 0 : i32
    %c0_i32_0 = arith.constant 0 : i32
    %c0_i32_1 = arith.constant 0 : i32
    return %c0_i32, %c0_i32_0 : i32, i32
  }
  func.func @transform_3(%arg0: i32) -> (i32, i32) {
    %c0_i32 = arith.constant 0 : i32
    %c0_i32_0 = arith.constant 0 : i32
    %c0_i32_1 = arith.constant 0 : i32
    return %c0_i32, %c0_i32_0 : i32, i32
  }
  func.func @transform_4(%arg0: i32) -> (i32, i32) {
    %c0_i32 = arith.constant 0 : i32
    %c0_i32_0 = arith.constant 0 : i32
    %c0_i32_1 = arith.constant 0 : i32
    return %c0_i32, %c0_i32_0 : i32, i32
  }
  func.func @transform_5(%arg0: i32) -> (i32, i32) {
    %c0_i32 = arith.constant 0 : i32
    %c0_i32_0 = arith.constant 0 : i32
    %c0_i32_1 = arith.constant 0 : i32
    return %c0_i32, %c0_i32_0 : i32, i32
  }
  func.func @transform_6(%arg0: i32) -> (i32, i32, i32) {
    %c0_i32 = arith.constant 0 : i32
    %c0_i32_0 = arith.constant 0 : i32
    %c0_i32_1 = arith.constant 0 : i32
    return %arg0, %c0_i32, %c0_i32_0 : i32, i32, i32
  }
}

</mosaic_0001>

<llo_original>
// kernel: residual_block_nobn.1
$region0: #{residual_block_nobn.1}
  #allocation0 [shape = 'u32[]', space=smem, size = 0x4, offset = 0x4, fixed_abs, tag = 'smem constant byte address 0x4 - core index']
  #allocation1 [shape = 'u32[144,128]{1,0:T(1,128)}', space=vmem, size = 0x12000, scoped, tag = 'internal scratch']
  #allocation2 [shape = 'f32[36,256]{1,0:T(8,128)}', space=vmem, size = 0xa000, scoped, tag = 'scratch operand']
  %s0 = inlined_call_operand.vmem [shape: f32[2,4,256], index: 0, kind: input, shape index: {}]
  %s1 = inlined_call_operand.vmem [shape: f32[9,1,256], index: 1, kind: input, shape index: {}]
  %s2 = inlined_call_operand.vmem [shape: f32[4,36], index: 2, kind: input, shape index: {}]
  %s3 = inlined_call_operand.vmem [shape: f32[4,1], index: 3, kind: input, shape index: {}]
  %s4 = inlined_call_operand.vmem [shape: f32[4,36], index: 4, kind: input, shape index: {}]
  %s5 = inlined_call_operand.vmem [shape: f32[4,1], index: 5, kind: input, shape index: {}]
  %s6 = inlined_call_operand.vmem [shape: f32[2,4,256], index: 6, kind: output, shape index: {}]
  %s7 = sld [smem:[#allocation0]]
  $region57: #{residual_block_nobn.1} parent=0
    _
  %s9 = ssub.s32 1, %s7
  %s10 = scalar_select 0, %s9, %s7
  loop: start=0, step=1, limit=4
  $region2: #{residual_block_nobn.1} parent=0 // loop_pre_header
    _
  $region3: #{residual_block_nobn.1} parent=0 // loop_header
    %s12 = sphi 0, %s16
    %p13 = scmp.ge.s32.totalorder %s12, 4
    %s22 = sphi 0, %s24
    %s25 = sphi 0, %s22
    %s26 = sphi 0, %s25
    %s42 = sphi 0, %s26
    %s46 = sphi 0, %s46
    %s48 = sphi 0, %s46
    %s49 = sphi 0, %s48
    %s63 = sphi 0, %s49
    %s67 = sphi 0, %s67
    %s69 = sphi 0, %s67
    %s70 = sphi 0, %s69
    %s84 = sphi 0, %s70
    %s88 = sphi 0, %s88
    %s90 = sphi 0, %s88
    %s91 = sphi 0, %s90
    %s105 = sphi 0, %s91
    %s109 = sphi 0, %s109
    %s111 = sphi 0, %s109
    %s112 = sphi 0, %s111
    %s126 = sphi 0, %s112
    %s130 = sphi 0, %s130
    %s132 = sphi 0, %s130
    %s133 = sphi 0, %s132
    %s147 = sphi 0, %s133
    %s153 = sphi 0, %s155
    %s156 = sphi 0, %s153
    %s157 = sphi 0, %s156
    %s173 = sphi 0, %s157
  $region4: #{residual_block_nobn.1} parent=0 // loop_header_branch
    %15 = sbr.rel (%p13) target = $region8
  $region5: #{residual_block_nobn.1} parent=0 // loop_body
    %s17 = ssub.s32 %s12, 1
    %s18 = ssub.s32 %s12, 2
    %s19 = sadd.s32 %s12, 1
    %s20 = ssub.s32 %s12, %s19
    %p21 = scmp.eq.s32.totalorder %s20, 0
    %s23 = sadd.s32 %s22, 1
    %s24 = scalar_select %p21, %s22, %s23
    %p27 = pneg %p21
    %p28 = scmp.eq.s32.totalorder %s12, 1
    %p29 = por %p27, %p28
    %p30 = scmp.ne.s32.totalorder %s22, %s25
    %p31 = scmp.eq.s32.totalorder %s12, 0
    %p32 = por %p30, %p31
    %p33 = scmp.ne.s32.totalorder %s22, %s25
    %p34 = scmp.eq.s32.totalorder %s17, 1
    %p35 = por %p33, %p34
    %p36 = scmp.ne.s32.totalorder %s25, %s26
    %p37 = scmp.eq.s32.totalorder %s17, 0
    %p38 = por %p36, %p37
    %p39 = scmp.ne.s32.totalorder %s25, %s26
    %p40 = scmp.eq.s32.totalorder %s18, 1
    %p41 = por %p39, %p40
    %p43 = scmp.ne.s32.totalorder %s26, %s42
    %p44 = scmp.eq.s32.totalorder %s18, 0
    %p45 = por %p43, %p44
    %s47 = sadd.s32 %s46, 1
    %p50 = scmp.eq.s32.totalorder %s12, 1
    %p51 = scmp.ne.s32.totalorder %s46, %s48
    %p52 = scmp.eq.s32.totalorder %s12, 0
    %p53 = por %p51, %p52
    %p54 = scmp.ne.s32.totalorder %s46, %s48
    %p55 = scmp.eq.s32.totalorder %s17, 1
    %p56 = por %p54, %p55
    %p57 = scmp.ne.s32.totalorder %s48, %s49
    %p58 = scmp.eq.s32.totalorder %s17, 0
    %p59 = por %p57, %p58
    %p60 = scmp.ne.s32.totalorder %s48, %s49
    %p61 = scmp.eq.s32.totalorder %s18, 1
    %p62 = por %p60, %p61
    %p64 = scmp.ne.s32.totalorder %s49, %s63
    %p65 = scmp.eq.s32.totalorder %s18, 0
    %p66 = por %p64, %p65
    %s68 = sadd.s32 %s67, 1
    %p71 = scmp.eq.s32.totalorder %s12, 1
    %p72 = scmp.ne.s32.totalorder %s67, %s69
    %p73 = scmp.eq.s32.totalorder %s12, 0
    %p74 = por %p72, %p73
    %p75 = scmp.ne.s32.totalorder %s67, %s69
    %p76 = scmp.eq.s32.totalorder %s17, 1
    %p77 = por %p75, %p76
    %p78 = scmp.ne.s32.totalorder %s69, %s70
    %p79 = scmp.eq.s32.totalorder %s17, 0
    %p80 = por %p78, %p79
    %p81 = scmp.ne.s32.totalorder %s69, %s70
    %p82 = scmp.eq.s32.totalorder %s18, 1
    %p83 = por %p81, %p82
    %p85 = scmp.ne.s32.totalorder %s70, %s84
    %p86 = scmp.eq.s32.totalorder %s18, 0
    %p87 = por %p85, %p86
    %s89 = sadd.s32 %s88, 1
    %p92 = scmp.eq.s32.totalorder %s12, 1
    %p93 = scmp.ne.s32.totalorder %s88, %s90
    %p94 = scmp.eq.s32.totalorder %s12, 0
    %p95 = por %p93, %p94
    %p96 = scmp.ne.s32.totalorder %s88, %s90
    %p97 = scmp.eq.s32.totalorder %s17, 1
    %p98 = por %p96, %p97
    %p99 = scmp.ne.s32.totalorder %s90, %s91
    %p100 = scmp.eq.s32.totalorder %s17, 0
    %p101 = por %p99, %p100
    %p102 = scmp.ne.s32.totalorder %s90, %s91
    %p103 = scmp.eq.s32.totalorder %s18, 1
    %p104 = por %p102, %p103
    %p106 = scmp.ne.s32.totalorder %s91, %s105
    %p107 = scmp.eq.s32.totalorder %s18, 0
    %p108 = por %p106, %p107
    %s110 = sadd.s32 %s109, 1
    %p113 = scmp.eq.s32.totalorder %s12, 1
    %p114 = scmp.ne.s32.totalorder %s109, %s111
    %p115 = scmp.eq.s32.totalorder %s12, 0
    %p116 = por %p114, %p115
    %p117 = scmp.ne.s32.totalorder %s109, %s111
    %p118 = scmp.eq.s32.totalorder %s17, 1
    %p119 = por %p117, %p118
    %p120 = scmp.ne.s32.totalorder %s111, %s112
    %p121 = scmp.eq.s32.totalorder %s17, 0
    %p122 = por %p120, %p121
    %p123 = scmp.ne.s32.totalorder %s111, %s112
    %p124 = scmp.eq.s32.totalorder %s18, 1
    %p125 = por %p123, %p124
    %p127 = scmp.ne.s32.totalorder %s112, %s126
    %p128 = scmp.eq.s32.totalorder %s18, 0
    %p129 = por %p127, %p128
    %s131 = sadd.s32 %s130, 1
    %p134 = scmp.eq.s32.totalorder %s12, 1
    %p135 = scmp.ne.s32.totalorder %s130, %s132
    %p136 = scmp.eq.s32.totalorder %s12, 0
    %p137 = por %p135, %p136
    %p138 = scmp.ne.s32.totalorder %s130, %s132
    %p139 = scmp.eq.s32.totalorder %s17, 1
    %p140 = por %p138, %p139
    %p141 = scmp.ne.s32.totalorder %s132, %s133
    %p142 = scmp.eq.s32.totalorder %s17, 0
    %p143 = por %p141, %p142
    %p144 = scmp.ne.s32.totalorder %s132, %s133
    %p145 = scmp.eq.s32.totalorder %s18, 1
    %p146 = por %p144, %p145
    %p148 = scmp.ne.s32.totalorder %s133, %s147
    %p149 = scmp.eq.s32.totalorder %s18, 0
    %p150 = por %p148, %p149
    %s151 = ssub.s32 %s12, %s19
    %p152 = scmp.eq.s32.totalorder %s151, 0
    %s154 = sadd.s32 %s153, 1
    %s155 = scalar_select %p152, %s153, %s154
    %p158 = pneg %p152
    %p159 = scmp.eq.s32.totalorder %s12, 1
    %p160 = por %p158, %p159
    %p161 = scmp.ne.s32.totalorder %s153, %s156
    %p162 = scmp.eq.s32.totalorder %s12, 0
    %p163 = por %p161, %p162
    %p164 = scmp.ne.s32.totalorder %s153, %s156
    %p165 = scmp.eq.s32.totalorder %s17, 1
    %p166 = por %p164, %p165
    %p167 = scmp.ne.s32.totalorder %s156, %s157
    %p168 = scmp.eq.s32.totalorder %s17, 0
    %p169 = por %p167, %p168
    %p170 = scmp.ne.s32.totalorder %s156, %s157
    %p171 = scmp.eq.s32.totalorder %s18, 1
    %p172 = por %p170, %p171
    %p174 = scmp.ne.s32.totalorder %s157, %s173
    %p175 = scmp.eq.s32.totalorder %s18, 0
    %p176 = por %p174, %p175
    %p177 = scmp.le.s32.totalorder 1, %s12
    %p178 = scmp.lt.s32.totalorder %s12, 3
    %p179 = pnand %p177, %p178
    %p180 = pneg %p179
    // Predicated region
    $region9: #{residual_block_nobn.1} parent=5 // pred_check
      _
    $region10: #{residual_block_nobn.1} parent=5 // pred_check_branch
      %182 = sbr.rel (%p179) target = $region12
    $region11: #{residual_block_nobn.1} parent=5 // pred_region
      %s183 = ssub.s32 %s12, 1
      // Predicated region
      $region13: #{residual_block_nobn.1} parent=11 // pred_check
        %p184 = pneg %p59
      $region14: #{residual_block_nobn.1} parent=11 // pred_check_branch
        %186 = sbr.rel (%p184) target = $region16
      $region15: #{residual_block_nobn.1} parent=11 // pred_region
        _
      $region16: #{residual_block_nobn.1} parent=11 // pred_fallthru
        _
      // Predicated region
      $region17: #{residual_block_nobn.1} parent=11 // pred_check
        %p187 = pneg %p80
      $region18: #{residual_block_nobn.1} parent=11 // pred_check_branch
        %189 = sbr.rel (%p187) target = $region20
      $region19: #{residual_block_nobn.1} parent=11 // pred_region
        _
      $region20: #{residual_block_nobn.1} parent=11 // pred_fallthru
        _
      // Predicated region
      $region21: #{residual_block_nobn.1} parent=11 // pred_check
        %p190 = pneg %p101
      $region22: #{residual_block_nobn.1} parent=11 // pred_check_branch
        %192 = sbr.rel (%p190) target = $region24
      $region23: #{residual_block_nobn.1} parent=11 // pred_region
        _
      $region24: #{residual_block_nobn.1} parent=11 // pred_fallthru
        _
      // Predicated region
      $region25: #{residual_block_nobn.1} parent=11 // pred_check
        %p193 = pneg %p122
      $region26: #{residual_block_nobn.1} parent=11 // pred_check_branch
        %195 = sbr.rel (%p193) target = $region28
      $region27: #{residual_block_nobn.1} parent=11 // pred_region
        _
      $region28: #{residual_block_nobn.1} parent=11 // pred_fallthru
        _
      // Predicated region
      $region29: #{residual_block_nobn.1} parent=11 // pred_check
        %p196 = pneg %p143
      $region30: #{residual_block_nobn.1} parent=11 // pred_check_branch
        %198 = sbr.rel (%p196) target = $region32
      $region31: #{residual_block_nobn.1} parent=11 // pred_region
        _
      $region32: #{residual_block_nobn.1} parent=11 // pred_fallthru
        _
    $region12: #{residual_block_nobn.1} parent=5 // pred_fallthru
      _
    %p199 = scmp.lt.s32.totalorder %s12, 2
    // Predicated region
    $region33: #{residual_block_nobn.1} parent=5 // pred_check
      %p200 = pneg %p199
    $region34: #{residual_block_nobn.1} parent=5 // pred_check_branch
      %202 = sbr.rel (%p200) target = $region36
    $region35: #{residual_block_nobn.1} parent=5 // pred_region
      // Predicated region
      $region37: #{residual_block_nobn.1} parent=35 // pred_check
        %p203 = pneg %p32
      $region38: #{residual_block_nobn.1} parent=35 // pred_check_branch
        %205 = sbr.rel (%p203) target = $region40
      $region39: #{residual_block_nobn.1} parent=35 // pred_region
        %p206 = scmp.lt.s32.totalorder %s12, 1
        %s207 = scalar_select %p206, %s12, 1
        %s208 = smul.addr %s207, 2
        %s209 = smul.addr %s208, 4
        %s210 = scalar_lea.vmem %s0, %s209
      $region40: #{residual_block_nobn.1} parent=35 // pred_fallthru
        _
    $region36: #{residual_block_nobn.1} parent=5 // pred_fallthru
      _
    %p211 = scmp.le.s32.totalorder 1, %s12
    %p212 = scmp.lt.s32.totalorder %s12, 3
    %p213 = pnand %p211, %p212
    %p214 = pneg %p213
    // Predicated region
    $region41: #{residual_block_nobn.1} parent=5 // pred_check
      _
    $region42: #{residual_block_nobn.1} parent=5 // pred_check_branch
      %216 = sbr.rel (%p213) target = $region44
    $region43: #{residual_block_nobn.1} parent=5 // pred_region
      %s217 = ssub.s32 %s12, 1
      %p218 = scmp.lt.s32.totalorder %s17, 1
      %s219 = scalar_select %p218, %s17, 1
      %s220 = smul.addr %s219, 2
      %s221 = smul.addr %s220, 4
      %s222 = scalar_lea.vmem %s0, %s221
      %p223 = pneg %p38
      %p224 = pneg %p35
      %p225 = pneg %p59
      %p226 = pneg %p56
      %p227 = pneg %p80
      %p228 = pneg %p77
      %p229 = pneg %p101
      %p230 = pneg %p98
      %p231 = pneg %p122
      %p232 = pneg %p119
      %p233 = pneg %p143
      %p234 = pneg %p140
      %p235 = pneg %p169
      %p236 = pneg %p166
      %p237 = scmp.lt.s32.totalorder %s17, 1
      %s238 = scalar_select %p237, %s17, 1
      %s239 = smul.addr %s238, 2
      %s240 = smul.addr %s239, 4
      %s241 = scalar_lea.vmem %s6, %s240
      %p242 = scmp.lt.s32.totalorder %s17, 1
      %s243 = scalar_select %p242, %s17, 1
      %s244 = smul.addr %s243, 2
      %s245 = smul.addr %s244, 4
      %s246 = scalar_lea.vmem %s0, %s245
      %p247 = scmp.lt.s32.totalorder %s17, 1
      %s248 = scalar_select %p247, %s17, 1
      %s249 = smul.addr %s248, 2
      %s250 = smul.addr %s249, 4
      %s251 = scalar_lea.vmem %s6, %s250
      %v252 = vld [vmem:[%s246] sm:$0xff]
      %v254 = vcombine.high %v252, %v252
      %256 = vrot.lane.b32.xlu0 %v252, 17
      %v257 = vpop.permute.xlu0 %256
      %258 = vrot.lane.b32.xlu0 %v254, 17
      %v259 = vpop.permute.xlu0 %258
      %v260 = vlaneseq
      %v261 = vand.u32 %v260, 127
      %vm262 = vcmp.lt.s32.totalorder %v261, 17
      %v263 = vsel %vm262, %v257, %v259
      %v264 = vsel %vm262, %v259, %v257
      %v265 = vld [vmem:[%s1] sm:$0x3]
      %v267 = vlaneseq
      %v268 = vshrl.u32 %v267, 7
      %v269 = vsub.s32 0, %v268
      %v270 = vrot.slane %v265, %v269
      %v271 = vlaneseq
      %v272 = vshrl.u32 %v271, 7
      %v273 = vsub.s32 1, %v272
      %v274 = vrot.slane %v265, %v273
      %v277 = vmul.f32 %v264, %v270
      %v278 = vmul.f32 %v263, %v274
      %279 = vst [vmem:[#allocation2] sm:$0xf] %v277
      %280 = vst [vmem:[#allocation2 + $0x8] sm:$0xf] %v278
      %281 = vrot.lane.b32.xlu0 %v252, 16
      %v282 = vpop.permute.xlu0 %281
      %283 = vrot.lane.b32.xlu0 %v254, 16
      %v284 = vpop.permute.xlu0 %283
      %vm285 = vcmp.lt.s32.totalorder %v261, 16
      %v286 = vsel %vm285, %v282, %v284
      %v287 = vsel %vm285, %v284, %v282
      %s288 = scalar_lea.vmem %s1, 2
      %v289 = vld [vmem:[%s288] sm:$0x3]
      %v291 = vlaneseq
      %v292 = vshrl.u32 %v291, 7
      %v293 = vsub.s32 0, %v292
      %v294 = vrot.slane %v289, %v293
      %v295 = vlaneseq
      %v296 = vshrl.u32 %v295, 7
      %v297 = vsub.s32 1, %v296
      %v298 = vrot.slane %v289, %v297
      %v301 = vmul.f32 %v287, %v294
      %v302 = vmul.f32 %v286, %v298
      %v305 = vrot.slane %v301, 4
      %v306 = vrot.slane %v302, 4
      %309 = vst [vmem:[#allocation2] sm:$0xf0] %v305
      %310 = vst [vmem:[#allocation2 + $0x8] sm:$0xf0] %v306
      %311 = vrot.lane.b32.xlu0 %v252, 15
      %v312 = vpop.permute.xlu0 %311
      %313 = vrot.lane.b32.xlu0 %v254, 15
      %v314 = vpop.permute.xlu0 %313
      %vm315 = vcmp.lt.s32.totalorder %v261, 15
      %v316 = vsel %vm315, %v312, %v314
      %v317 = vsel %vm315, %v314, %v312
      %s318 = scalar_lea.vmem %s1, 4
      %v319 = vld [vmem:[%s318] sm:$0x3]
      %v321 = vlaneseq
      %v322 = vshrl.u32 %v321, 7
      %v323 = vsub.s32 0, %v322
      %v324 = vrot.slane %v319, %v323
      %v325 = vlaneseq
      %v326 = vshrl.u32 %v325, 7
      %v327 = vsub.s32 1, %v326
      %v328 = vrot.slane %v319, %v327
      %v331 = vmul.f32 %v317, %v324
      %v332 = vmul.f32 %v316, %v328
      %333 = vst [vmem:[#allocation2 + $0x10] sm:$0xf] %v331
      %334 = vst [vmem:[#allocation2 + $0x18] sm:$0xf] %v332
      %335 = vrot.lane.b32.xlu0 %v252, 1
      %v336 = vpop.permute.xlu0 %335
      %337 = vrot.lane.b32.xlu0 %v254, 1
      %v338 = vpop.permute.xlu0 %337
      %vm339 = vcmp.lt.s32.totalorder %v261, 1
      %v340 = vsel %vm339, %v336, %v338
      %v341 = vsel %vm339, %v338, %v336
      %s342 = scalar_lea.vmem %s1, 6
      %v343 = vld [vmem:[%s342] sm:$0x3]
      %v345 = vlaneseq
      %v346 = vshrl.u32 %v345, 7
      %v347 = vsub.s32 0, %v346
      %v348 = vrot.slane %v343, %v347
      %v349 = vlaneseq
      %v350 = vshrl.u32 %v349, 7
      %v351 = vsub.s32 1, %v350
      %v352 = vrot.slane %v343, %v351
      %v355 = vmul.f32 %v341, %v348
      %v356 = vmul.f32 %v340, %v352
      %v359 = vrot.slane %v355, 4
      %v360 = vrot.slane %v356, 4
      %363 = vst [vmem:[#allocation2 + $0x10] sm:$0xf0] %v359
      %364 = vst [vmem:[#allocation2 + $0x18] sm:$0xf0] %v360
      %s365 = scalar_lea.vmem %s1, 8
      %v366 = vld [vmem:[%s365] sm:$0x3]
      %v368 = vlaneseq
      %v369 = vshrl.u32 %v368, 7
      %v370 = vsub.s32 0, %v369
      %v371 = vrot.slane %v366, %v370
      %v372 = vlaneseq
      %v373 = vshrl.u32 %v372, 7
      %v374 = vsub.s32 1, %v373
      %v375 = vrot.slane %v366, %v374
      %v376 = vcombine.low %v371, %v375
      %v378 = vmul.f32 %v252, %v376
      %v380 = vcombine.high %v378, %v378
      %382 = vst [vmem:[#allocation2 + $0x20] sm:$0xf] %v378
      %383 = vst [vmem:[#allocation2 + $0x28] sm:$0xf] %v380
      %384 = vrot.lane.b32.xlu0 %v252, 127
      %v385 = vpop.permute.xlu0 %384
      %386 = vrot.lane.b32.xlu0 %v254, 127
      %v387 = vpop.permute.xlu0 %386
      %vm388 = vcmp.lt.s32.totalorder %v261, 127
      %v389 = vsel %vm388, %v385, %v387
      %v390 = vsel %vm388, %v387, %v385
      %s391 = scalar_lea.vmem %s1, 10
      %v392 = vld [vmem:[%s391] sm:$0x3]
      %v394 = vlaneseq
      %v395 = vshrl.u32 %v394, 7
      %v396 = vsub.s32 0, %v395
      %v397 = vrot.slane %v392, %v396
      %v398 = vlaneseq
      %v399 = vshrl.u32 %v398, 7
      %v400 = vsub.s32 1, %v399
      %v401 = vrot.slane %v392, %v400
      %v404 = vmul.f32 %v389, %v397
      %v405 = vmul.f32 %v390, %v401
      %v408 = vrot.slane %v404, 4
      %v409 = vrot.slane %v405, 4
      %412 = vst [vmem:[#allocation2 + $0x20] sm:$0xf0] %v408
      %413 = vst [vmem:[#allocation2 + $0x28] sm:$0xf0] %v409
      %414 = vrot.lane.b32.xlu0 %v252, 113
      %v415 = vpop.permute.xlu0 %414
      %416 = vrot.lane.b32.xlu0 %v254, 113
      %v417 = vpop.permute.xlu0 %416
      %vm418 = vcmp.lt.s32.totalorder %v261, 113
      %v419 = vsel %vm418, %v415, %v417
      %v420 = vsel %vm418, %v417, %v415
      %s421 = scalar_lea.vmem %s1, 12
      %v422 = vld [vmem:[%s421] sm:$0x3]
      %v424 = vlaneseq
      %v425 = vshrl.u32 %v424, 7
      %v426 = vsub.s32 0, %v425
      %v427 = vrot.slane %v422, %v426
      %v428 = vlaneseq
      %v429 = vshrl.u32 %v428, 7
      %v430 = vsub.s32 1, %v429
      %v431 = vrot.slane %v422, %v430
      %v434 = vmul.f32 %v419, %v427
      %v435 = vmul.f32 %v420, %v431
      %436 = vst [vmem:[#allocation2 + $0x30] sm:$0xf] %v434
      %437 = vst [vmem:[#allocation2 + $0x38] sm:$0xf] %v435
      %438 = vrot.lane.b32.xlu0 %v252, 112
      %v439 = vpop.permute.xlu0 %438
      %440 = vrot.lane.b32.xlu0 %v254, 112
      %v441 = vpop.permute.xlu0 %440
      %vm442 = vcmp.lt.s32.totalorder %v261, 112
      %v443 = vsel %vm442, %v439, %v441
      %v444 = vsel %vm442, %v441, %v439
      %s445 = scalar_lea.vmem %s1, 14
      %v446 = vld [vmem:[%s445] sm:$0x3]
      %v448 = vlaneseq
      %v449 = vshrl.u32 %v448, 7
      %v450 = vsub.s32 0, %v449
      %v451 = vrot.slane %v446, %v450
      %v452 = vlaneseq
      %v453 = vshrl.u32 %v452, 7
      %v454 = vsub.s32 1, %v453
      %v455 = vrot.slane %v446, %v454
      %v458 = vmul.f32 %v443, %v451
      %v459 = vmul.f32 %v444, %v455
      %v462 = vrot.slane %v458, 4
      %v463 = vrot.slane %v459, 4
      %466 = vst [vmem:[#allocation2 + $0x30] sm:$0xf0] %v462
      %467 = vst [vmem:[#allocation2 + $0x38] sm:$0xf0] %v463
      %468 = vrot.lane.b32.xlu0 %v252, 111
      %v469 = vpop.permute.xlu0 %468
      %470 = vrot.lane.b32.xlu0 %v254, 111
      %v471 = vpop.permute.xlu0 %470
      %vm472 = vcmp.lt.s32.totalorder %v261, 111
      %v473 = vsel %vm472, %v469, %v471
      %v474 = vsel %vm472, %v471, %v469
      %s475 = scalar_lea.vmem %s1, 16
      %v476 = vld [vmem:[%s475] sm:$0x3]
      %v478 = vlaneseq
      %v479 = vshrl.u32 %v478, 7
      %v480 = vsub.s32 0, %v479
      %v481 = vrot.slane %v476, %v480
      %v482 = vlaneseq
      %v483 = vshrl.u32 %v482, 7
      %v484 = vsub.s32 1, %v483
      %v485 = vrot.slane %v476, %v484
      %v488 = vmul.f32 %v473, %v481
      %v489 = vmul.f32 %v474, %v485
      %490 = vst [vmem:[#allocation2 + $0x40] sm:$0xf] %v488
      %491 = vst [vmem:[#allocation2 + $0x48] sm:$0xf] %v489
      %v492 = vld [vmem:[%s2] sm:$0xf]
      %v493 = vld [vmem:[#allocation2] sm:$0xff]
      %v494 = vld [vmem:[#allocation2 + $0x8] sm:$0xff]
      %v495 = vld [vmem:[#allocation2 + $0x10] sm:$0xff]
      %v496 = vld [vmem:[#allocation2 + $0x18] sm:$0xff]
      %v497 = vld [vmem:[#allocation2 + $0x20] sm:$0xff]
      %v498 = vld [vmem:[#allocation2 + $0x28] sm:$0xff]
      %v499 = vld [vmem:[#allocation2 + $0x30] sm:$0xff]
      %v500 = vld [vmem:[#allocation2 + $0x38] sm:$0xff]
      %v501 = vld [vmem:[#allocation2 + $0x40] sm:$0xf]
      %v502 = vld [vmem:[#allocation2 + $0x48] sm:$0xf]
      %v503 = vld [vmem:[%s3] sm:$0xf]
      %505 = vset.pattern.permute.xlu0 0
      %506 = vperm.xlu0 %505, %v503
      %v507 = vpop.permute.xlu0 %506
      %vm509 = vcmask 293888
      %v511 = vsel %vm509, %v492, 0
      %vm513 = vcmask 1043456
      %v515 = vsel %vm513, %v501, 0
      %v518 = vsel %vm513, %v502, 0
      %520 = vmatprep.subr.mxu0 0.0
      %521 = vmatpush1.msra.mxu0 0.0
      %522 = vmatprep.subr.mxu0 0.0
      %523 = vmatpush1.msra.mxu0 0.0
      %524 = vmatprep.subr.mxu0 0.0
      %525 = vmatpush1.msra.mxu0 0.0
      %526 = vmatprep.subr.mxu0 0.0
      %527 = vmatpush1.msra.mxu0 0.0
      %528 = vmatprep.subr.mxu0 0.0
      %529 = vmatpush1.msra.mxu0 0.0
      %530 = vmatprep.subr.mxu0 0.0
      %531 = vmatpush1.msra.mxu0 0.0
      %532 = vmatprep.subr.mxu0 0.0
      %533 = vmatpush1.msra.mxu0 0.0
      %534 = vmatprep.subr.mxu0 0.0
      %535 = vmatpush1.msra.mxu0 0.0
      %536 = vmatprep.subr.mxu0 0.0
      %537 = vmatpush1.msra.mxu0 0.0
      %538 = vmatprep.subr.mxu0 0.0
      %539 = vmatpush1.msra.mxu0 0.0
      %540 = vmatprep.subr.mxu0 0.0
      %541 = vmatpush1.msra.mxu0 0.0
      %542 = vmatprep.subr.mxu0 %v518
      %543 = vmatpush1.msra.mxu0 %v515
      %544 = vmatprep.subr.mxu0 %v500
      %545 = vmatpush1.msra.mxu0 %v499
      %546 = vmatprep.subr.mxu0 %v498
      %547 = vmatpush1.msra.mxu0 %v497
      %548 = vmatprep.subr.mxu0 %v496
      %549 = vmatpush1.msra.mxu0 %v495
      %550 = vmatprep.subr.mxu0 %v494
      %551 = vmatpush1.msra.mxu0 %v493
      %552 = vmatprep.subr.mxu0 0.0
      %553 = vmatpush2.msra.mxu0 0.0
      %554 = vmatprep.subr.mxu0 0.0
      %555 = vmatpush2.msra.mxu0 0.0
      %556 = vmatprep.subr.mxu0 0.0
      %557 = vmatpush2.msra.mxu0 0.0
      %558 = vmatprep.subr.mxu0 0.0
      %559 = vmatpush2.msra.mxu0 0.0
      %560 = vmatprep.subr.mxu0 0.0
      %561 = vmatpush2.msra.mxu0 0.0
      %562 = vmatprep.subr.mxu0 0.0
      %563 = vmatpush2.msra.mxu0 0.0
      %564 = vmatprep.subr.mxu0 0.0
      %565 = vmatpush2.msra.mxu0 0.0
      %566 = vmatprep.subr.mxu0 0.0
      %567 = vmatpush2.msra.mxu0 0.0
      %568 = vmatprep.subr.mxu0 0.0
      %569 = vmatpush2.msra.mxu0 0.0
      %570 = vmatprep.subr.mxu0 0.0
      %571 = vmatpush2.msra.mxu0 0.0
      %572 = vmatprep.subr.mxu0 0.0
      %573 = vmatpush2.msra.mxu0 0.0
      %574 = vmatprep.subr.mxu0 0.0
      %575 = vmatpush2.msra.mxu0 0.0
      %576 = vmatprep.subr.mxu0 0.0
      %577 = vmatpush2.msra.mxu0 0.0
      %578 = vmatprep.subr.mxu0 0.0
      %579 = vmatpush2.msra.mxu0 0.0
      %580 = vmatprep.subr.mxu0 0.0
      %581 = vmatpush2.msra.mxu0 0.0
      %582 = vmatprep.subr.mxu0 0.0
      %583 = vmatpush2.msra.mxu0 0.0
      %584 = vmatprep.mubr.f32.mxu0 0.0
      %585 = vmatmul.mubr.f32.gmra.mxu0 %v511
      %v586 = vpop.f32.mrf.mxu0
      %v587 = vadd.f32 %v507, %v586
      %v588 = vpop.f32.mrf.mxu0
      %v589 = vadd.f32 %v507, %v588
      %590 = vdwg.mxu0
      %v591 = vmax.f32 %v587, 0.0
      %v592 = vmax.f32 %v589, 0.0
      %593 = vrot.lane.b32.xlu0 %v591, 17
      %v594 = vpop.permute.xlu0 %593
      %595 = vrot.lane.b32.xlu0 %v592, 17
      %v596 = vpop.permute.xlu0 %595
      %v597 = vsel %vm262, %v594, %v596
      %v598 = vsel %vm262, %v596, %v594
      %v599 = vld [vmem:[%s1] sm:$0x3]
      %v601 = vlaneseq
      %v602 = vshrl.u32 %v601, 7
      %v603 = vsub.s32 0, %v602
      %v604 = vrot.slane %v599, %v603
      %v605 = vlaneseq
      %v606 = vshrl.u32 %v605, 7
      %v607 = vsub.s32 1, %v606
      %v608 = vrot.slane %v599, %v607
      %v611 = vmul.f32 %v598, %v604
      %v612 = vmul.f32 %v597, %v608
      %613 = vst [vmem:[#allocation2] sm:$0xf] %v611
      %614 = vst [vmem:[#allocation2 + $0x8] sm:$0xf] %v612
      %615 = vrot.lane.b32.xlu0 %v591, 16
      %v616 = vpop.permute.xlu0 %615
      %617 = vrot.lane.b32.xlu0 %v592, 16
      %v618 = vpop.permute.xlu0 %617
      %v619 = vsel %vm285, %v616, %v618
      %v620 = vsel %vm285, %v618, %v616
      %v621 = vld [vmem:[%s288] sm:$0x3]
      %v623 = vlaneseq
      %v624 = vshrl.u32 %v623, 7
      %v625 = vsub.s32 0, %v624
      %v626 = vrot.slane %v621, %v625
      %v627 = vlaneseq
      %v628 = vshrl.u32 %v627, 7
      %v629 = vsub.s32 1, %v628
      %v630 = vrot.slane %v621, %v629
      %v633 = vmul.f32 %v620, %v626
      %v634 = vmul.f32 %v619, %v630
      %v637 = vrot.slane %v633, 4
      %v638 = vrot.slane %v634, 4
      %641 = vst [vmem:[#allocation2] sm:$0xf0] %v637
      %642 = vst [vmem:[#allocation2 + $0x8] sm:$0xf0] %v638
      %643 = vrot.lane.b32.xlu0 %v591, 15
      %v644 = vpop.permute.xlu0 %643
      %645 = vrot.lane.b32.xlu0 %v592, 15
      %v646 = vpop.permute.xlu0 %645
      %v647 = vsel %vm315, %v644, %v646
      %v648 = vsel %vm315, %v646, %v644
      %v649 = vld [vmem:[%s318] sm:$0x3]
      %v651 = vlaneseq
      %v652 = vshrl.u32 %v651, 7
      %v653 = vsub.s32 0, %v652
      %v654 = vrot.slane %v649, %v653
      %v655 = vlaneseq
      %v656 = vshrl.u32 %v655, 7
      %v657 = vsub.s32 1, %v656
      %v658 = vrot.slane %v649, %v657
      %v661 = vmul.f32 %v648, %v654
      %v662 = vmul.f32 %v647, %v658
      %663 = vst [vmem:[#allocation2 + $0x10] sm:$0xf] %v661
      %664 = vst [vmem:[#allocation2 + $0x18] sm:$0xf] %v662
      %665 = vrot.lane.b32.xlu0 %v591, 1
      %v666 = vpop.permute.xlu0 %665
      %667 = vrot.lane.b32.xlu0 %v592, 1
      %v668 = vpop.permute.xlu0 %667
      %v669 = vsel %vm339, %v666, %v668
      %v670 = vsel %vm339, %v668, %v666
      %v671 = vld [vmem:[%s342] sm:$0x3]
      %v673 = vlaneseq
      %v674 = vshrl.u32 %v673, 7
      %v675 = vsub.s32 0, %v674
      %v676 = vrot.slane %v671, %v675
      %v677 = vlaneseq
      %v678 = vshrl.u32 %v677, 7
      %v679 = vsub.s32 1, %v678
      %v680 = vrot.slane %v671, %v679
      %v683 = vmul.f32 %v670, %v676
      %v684 = vmul.f32 %v669, %v680
      %v687 = vrot.slane %v683, 4
      %v688 = vrot.slane %v684, 4
      %691 = vst [vmem:[#allocation2 + $0x10] sm:$0xf0] %v687
      %692 = vst [vmem:[#allocation2 + $0x18] sm:$0xf0] %v688
      %v693 = vld [vmem:[%s365] sm:$0x3]
      %v695 = vlaneseq
      %v696 = vshrl.u32 %v695, 7
      %v697 = vsub.s32 0, %v696
      %v698 = vrot.slane %v693, %v697
      %v699 = vlaneseq
      %v700 = vshrl.u32 %v699, 7
      %v701 = vsub.s32 1, %v700
      %v702 = vrot.slane %v693, %v701
      %v705 = vmul.f32 %v591, %v698
      %v706 = vmul.f32 %v592, %v702
      %707 = vst [vmem:[#allocation2 + $0x20] sm:$0xf] %v705
      %708 = vst [vmem:[#allocation2 + $0x28] sm:$0xf] %v706
      %709 = vrot.lane.b32.xlu0 %v591, 127
      %v710 = vpop.permute.xlu0 %709
      %711 = vrot.lane.b32.xlu0 %v592, 127
      %v712 = vpop.permute.xlu0 %711
      %v713 = vsel %vm388, %v710, %v712
      %v714 = vsel %vm388, %v712, %v710
      %v715 = vld [vmem:[%s391] sm:$0x3]
      %v717 = vlaneseq
      %v718 = vshrl.u32 %v717, 7
      %v719 = vsub.s32 0, %v718
      %v720 = vrot.slane %v715, %v719
      %v721 = vlaneseq
      %v722 = vshrl.u32 %v721, 7
      %v723 = vsub.s32 1, %v722
      %v724 = vrot.slane %v715, %v723
      %v727 = vmul.f32 %v713, %v720
      %v728 = vmul.f32 %v714, %v724
      %v731 = vrot.slane %v727, 4
      %v732 = vrot.slane %v728, 4
      %735 = vst [vmem:[#allocation2 + $0x20] sm:$0xf0] %v731
      %736 = vst [vmem:[#allocation2 + $0x28] sm:$0xf0] %v732
      %737 = vrot.lane.b32.xlu0 %v591, 113
      %v738 = vpop.permute.xlu0 %737
      %739 = vrot.lane.b32.xlu0 %v592, 113
      %v740 = vpop.permute.xlu0 %739
      %v741 = vsel %vm418, %v738, %v740
      %v742 = vsel %vm418, %v740, %v738
      %v743 = vld [vmem:[%s421] sm:$0x3]
      %v745 = vlaneseq
      %v746 = vshrl.u32 %v745, 7
      %v747 = vsub.s32 0, %v746
      %v748 = vrot.slane %v743, %v747
      %v749 = vlaneseq
      %v750 = vshrl.u32 %v749, 7
      %v751 = vsub.s32 1, %v750
      %v752 = vrot.slane %v743, %v751
      %v755 = vmul.f32 %v741, %v748
      %v756 = vmul.f32 %v742, %v752
      %757 = vst [vmem:[#allocation2 + $0x30] sm:$0xf] %v755
      %758 = vst [vmem:[#allocation2 + $0x38] sm:$0xf] %v756
      %759 = vrot.lane.b32.xlu0 %v591, 112
      %v760 = vpop.permute.xlu0 %759
      %761 = vrot.lane.b32.xlu0 %v592, 112
      %v762 = vpop.permute.xlu0 %761
      %v763 = vsel %vm442, %v760, %v762
      %v764 = vsel %vm442, %v762, %v760
      %v765 = vld [vmem:[%s445] sm:$0x3]
      %v767 = vlaneseq
      %v768 = vshrl.u32 %v767, 7
      %v769 = vsub.s32 0, %v768
      %v770 = vrot.slane %v765, %v769
      %v771 = vlaneseq
      %v772 = vshrl.u32 %v771, 7
      %v773 = vsub.s32 1, %v772
      %v774 = vrot.slane %v765, %v773
      %v777 = vmul.f32 %v763, %v770
      %v778 = vmul.f32 %v764, %v774
      %v781 = vrot.slane %v777, 4
      %v782 = vrot.slane %v778, 4
      %785 = vst [vmem:[#allocation2 + $0x30] sm:$0xf0] %v781
      %786 = vst [vmem:[#allocation2 + $0x38] sm:$0xf0] %v782
      %787 = vrot.lane.b32.xlu0 %v591, 111
      %v788 = vpop.permute.xlu0 %787
      %789 = vrot.lane.b32.xlu0 %v592, 111
      %v790 = vpop.permute.xlu0 %789
      %v791 = vsel %vm472, %v788, %v790
      %v792 = vsel %vm472, %v790, %v788
      %v793 = vld [vmem:[%s475] sm:$0x3]
      %v795 = vlaneseq
      %v796 = vshrl.u32 %v795, 7
      %v797 = vsub.s32 0, %v796
      %v798 = vrot.slane %v793, %v797
      %v799 = vlaneseq
      %v800 = vshrl.u32 %v799, 7
      %v801 = vsub.s32 1, %v800
      %v802 = vrot.slane %v793, %v801
      %v805 = vmul.f32 %v791, %v798
      %v806 = vmul.f32 %v792, %v802
      %807 = vst [vmem:[#allocation2 + $0x40] sm:$0xf] %v805
      %808 = vst [vmem:[#allocation2 + $0x48] sm:$0xf] %v806
      %v809 = vld [vmem:[%s4] sm:$0xf]
      %v810 = vld [vmem:[#allocation2] sm:$0xff]
      %v811 = vld [vmem:[#allocation2 + $0x8] sm:$0xff]
      %v812 = vld [vmem:[#allocation2 + $0x10] sm:$0xff]
      %v813 = vld [vmem:[#allocation2 + $0x18] sm:$0xff]
      %v814 = vld [vmem:[#allocation2 + $0x20] sm:$0xff]
      %v815 = vld [vmem:[#allocation2 + $0x28] sm:$0xff]
      %v816 = vld [vmem:[#allocation2 + $0x30] sm:$0xff]
      %v817 = vld [vmem:[#allocation2 + $0x38] sm:$0xff]
      %v818 = vld [vmem:[#allocation2 + $0x40] sm:$0xf]
      %v819 = vld [vmem:[#allocation2 + $0x48] sm:$0xf]
      %v820 = vld [vmem:[%s5] sm:$0xf]
      %822 = vset.pattern.permute.xlu0 0
      %823 = vperm.xlu0 %822, %v820
      %v824 = vpop.permute.xlu0 %823
      %v827 = vsel %vm509, %v809, 0
      %v830 = vsel %vm513, %v818, 0
      %v833 = vsel %vm513, %v819, 0
      %835 = vmatprep.subr.mxu0 0.0
      %836 = vmatpush1.msra.mxu0 0.0
      %837 = vmatprep.subr.mxu0 0.0
      %838 = vmatpush1.msra.mxu0 0.0
      %839 = vmatprep.subr.mxu0 0.0
      %840 = vmatpush1.msra.mxu0 0.0
      %841 = vmatprep.subr.mxu0 0.0
      %842 = vmatpush1.msra.mxu0 0.0
      %843 = vmatprep.subr.mxu0 0.0
      %844 = vmatpush1.msra.mxu0 0.0
      %845 = vmatprep.subr.mxu0 0.0
      %846 = vmatpush1.msra.mxu0 0.0
      %847 = vmatprep.subr.mxu0 0.0
      %848 = vmatpush1.msra.mxu0 0.0
      %849 = vmatprep.subr.mxu0 0.0
      %850 = vmatpush1.msra.mxu0 0.0
      %851 = vmatprep.subr.mxu0 0.0
      %852 = vmatpush1.msra.mxu0 0.0
      %853 = vmatprep.subr.mxu0 0.0
      %854 = vmatpush1.msra.mxu0 0.0
      %855 = vmatprep.subr.mxu0 0.0
      %856 = vmatpush1.msra.mxu0 0.0
      %857 = vmatprep.subr.mxu0 %v833
      %858 = vmatpush1.msra.mxu0 %v830
      %859 = vmatprep.subr.mxu0 %v817
      %860 = vmatpush1.msra.mxu0 %v816
      %861 = vmatprep.subr.mxu0 %v815
      %862 = vmatpush1.msra.mxu0 %v814
      %863 = vmatprep.subr.mxu0 %v813
      %864 = vmatpush1.msra.mxu0 %v812
      %865 = vmatprep.subr.mxu0 %v811
      %866 = vmatpush1.msra.mxu0 %v810
      %867 = vmatprep.subr.mxu0 0.0
      %868 = vmatpush2.msra.mxu0 0.0
      %869 = vmatprep.subr.mxu0 0.0
      %870 = vmatpush2.msra.mxu0 0.0
      %871 = vmatprep.subr.mxu0 0.0
      %872 = vmatpush2.msra.mxu0 0.0
      %873 = vmatprep.subr.mxu0 0.0
      %874 = vmatpush2.msra.mxu0 0.0
      %875 = vmatprep.subr.mxu0 0.0
      %876 = vmatpush2.msra.mxu0 0.0
      %877 = vmatprep.subr.mxu0 0.0
      %878 = vmatpush2.msra.mxu0 0.0
      %879 = vmatprep.subr.mxu0 0.0
      %880 = vmatpush2.msra.mxu0 0.0
      %881 = vmatprep.subr.mxu0 0.0
      %882 = vmatpush2.msra.mxu0 0.0
      %883 = vmatprep.subr.mxu0 0.0
      %884 = vmatpush2.msra.mxu0 0.0
      %885 = vmatprep.subr.mxu0 0.0
      %886 = vmatpush2.msra.mxu0 0.0
      %887 = vmatprep.subr.mxu0 0.0
      %888 = vmatpush2.msra.mxu0 0.0
      %889 = vmatprep.subr.mxu0 0.0
      %890 = vmatpush2.msra.mxu0 0.0
      %891 = vmatprep.subr.mxu0 0.0
      %892 = vmatpush2.msra.mxu0 0.0
      %893 = vmatprep.subr.mxu0 0.0
      %894 = vmatpush2.msra.mxu0 0.0
      %895 = vmatprep.subr.mxu0 0.0
      %896 = vmatpush2.msra.mxu0 0.0
      %897 = vmatprep.subr.mxu0 0.0
      %898 = vmatpush2.msra.mxu0 0.0
      %899 = vmatprep.mubr.f32.mxu0 0.0
      %900 = vmatmul.mubr.f32.gmra.mxu0 %v827
      %v901 = vpop.f32.mrf.mxu0
      %v902 = vadd.f32 %v824, %v901
      %v903 = vpop.f32.mrf.mxu0
      %v904 = vadd.f32 %v824, %v903
      %905 = vdwg.mxu0
      %v908 = vcombine.low %v902, %v904
      %v910 = vadd.f32 %v252, %v908
      %911 = vst [vmem:[%s251] sm:$0xff] %v910
      %p912 = scmp.lt.s32.totalorder %s17, 1
      %s913 = scalar_select %p912, %s17, 1
      %s914 = smul.addr %s913, 2
      %s915 = smul.addr %s914, 4
      %s916 = scalar_lea.vmem %s6, %s915
      // Predicated region
      $region45: #{residual_block_nobn.1} parent=43 // pred_check
        %p917 = pneg %p166
      $region46: #{residual_block_nobn.1} parent=43 // pred_check_branch
        %919 = sbr.rel (%p917) target = $region48
      $region47: #{residual_block_nobn.1} parent=43 // pred_region
        _
      $region48: #{residual_block_nobn.1} parent=43 // pred_fallthru
        _
    $region44: #{residual_block_nobn.1} parent=5 // pred_fallthru
      _
    %p920 = scmp.le.s32.totalorder 2, %s12
    // Predicated region
    $region49: #{residual_block_nobn.1} parent=5 // pred_check
      %p921 = pneg %p920
    $region50: #{residual_block_nobn.1} parent=5 // pred_check_branch
      %923 = sbr.rel (%p921) target = $region52
    $region51: #{residual_block_nobn.1} parent=5 // pred_region
      %s924 = ssub.s32 %s12, 2
      // Predicated region
      $region53: #{residual_block_nobn.1} parent=51 // pred_check
        %p925 = pneg %p172
      $region54: #{residual_block_nobn.1} parent=51 // pred_check_branch
        %927 = sbr.rel (%p925) target = $region56
      $region55: #{residual_block_nobn.1} parent=51 // pred_region
        %p928 = scmp.lt.s32.totalorder %s18, 1
        %s929 = scalar_select %p928, %s18, 1
        %s930 = smul.addr %s929, 2
        %s931 = smul.addr %s930, 4
        %s932 = scalar_lea.vmem %s6, %s931
      $region56: #{residual_block_nobn.1} parent=51 // pred_fallthru
        _
    $region52: #{residual_block_nobn.1} parent=5 // pred_fallthru
      _
  $region6: #{residual_block_nobn.1} parent=0 // loop_footer
    %s16 = sadd.s32 1, %s12
  $region7: #{residual_block_nobn.1} parent=0 // loop_footer_branch
    %11 = sbr.rel target = $region3
  $region8: #{residual_block_nobn.1} parent=0 // loop_exit
    _

</llo_original>
